<compile_context>
chip_gen: v5e
topology: v5e:2x2
jax: 0.10.0
libtpu: 0.0.40
codegen_flags: <defaults>
</compile_context>

<pallas_src>
import functools
import math

import jax
import jax.numpy as jnp
from jax.experimental import pallas as pl
from jax.experimental.pallas import tpu as pltpu


# --------------------------------------------------------------------------
# Helpers
# --------------------------------------------------------------------------
@functools.lru_cache(maxsize=None)
def _vmem_limit_bytes():
    """~3/4 of physical VMEM (64 MiB on v7x, 128 MiB on v5e/v6e), capped."""
    try:
        cap = pltpu.get_tpu_info().vmem_capacity_bytes
        return int(max(32 * 1024 * 1024, min(cap * 3 // 4, 100 * 1024 * 1024)))
    except Exception:
        return 48 * 1024 * 1024


def _pick_tile(total, target, multiple):
    """Largest divisor of `total` that is <= target and a multiple of
    `multiple`; falls back to the full extent (always a legal block dim)."""
    if total <= target:
        return total
    best = None
    for t in range(multiple, target + 1, multiple):
        if total % t == 0:
            best = t
    return best if best is not None else total


# --------------------------------------------------------------------------
# Kernel 1: plain matmul + bias + LeakyReLU (layer 1, taps pre-folded in the
# wrapper so there are no wrap columns and no norm).  Tiled over (N, P, Cout),
# all axes parallel.
# --------------------------------------------------------------------------
def _mm_act_kernel(x_ref, w_ref, b_ref, o_ref, *, slope):
    y = jnp.dot(x_ref[...], w_ref[...], preferred_element_type=jnp.float32)
    y = y + b_ref[...]
    y = jnp.where(y > 0, y, slope * y)
    o_ref[...] = y.astype(o_ref.dtype)


def _matmul_bias_lrelu(x, w, b, *, slope=0.2, out_dtype=jnp.bfloat16,
                       p_tile=2048, c_tile=256):
    """x: (N, P, K) bf16, w: (K, Cout) bf16, b: (1, Cout) f32 -> (N, P, Cout)."""
    N, P, K = x.shape
    _, Cout = w.shape
    pt = _pick_tile(P, p_tile, 8)
    ct = _pick_tile(Cout, c_tile, 128)
    grid = (N, P // pt, Cout // ct)
    return pl.pallas_call(
        functools.partial(_mm_act_kernel, slope=slope),
        out_shape=jax.ShapeDtypeStruct((N, P, Cout), out_dtype),
        grid_spec=pltpu.PrefetchScalarGridSpec(
            num_scalar_prefetch=0,
            grid=grid,
            in_specs=[
                pl.BlockSpec((None, pt, K), lambda n, i, j: (n, i, 0)),
                pl.BlockSpec((K, ct), lambda n, i, j: (0, j)),
                pl.BlockSpec((1, ct), lambda n, i, j: (0, j)),
            ],
            out_specs=pl.BlockSpec((None, pt, ct), lambda n, i, j: (n, i, j)),
        ),
        compiler_params=pltpu.CompilerParams(
            dimension_semantics=("parallel", "parallel", "parallel"),
            vmem_limit_bytes=_vmem_limit_bytes(),
        ),
    )(x, w, b)


# --------------------------------------------------------------------------
# Kernel 2: fused s2d-conv + bias + InstanceNorm + LeakyReLU (layers 2-4).
# The 4 tap slabs are copied once into a 128-lane-aligned VMEM scratch, then
# one deep (Pfull, 4K) x (4K, ctile) MXU matmul.  The wrap-column validity
# mask is generated in-kernel (float floor-div; no vector integer mod).
# --------------------------------------------------------------------------
def _down_kernel(x_ref, w_ref, b_ref, o_ref, cat_ref, *,
                 tap_offsets, pfull, ws, ow, eps, slope):
    k = x_ref.shape[-1]
    for t, off in enumerate(tap_offsets):
        cat_ref[:, t * k:(t + 1) * k] = x_ref[off:off + pfull, :]
    y = jnp.dot(cat_ref[...], w_ref[...], preferred_element_type=jnp.float32)
    y = y + b_ref[...]

    # InstanceNorm2d (affine=False, eps=1e-5): per-channel over the OH*OW
    # valid positions; wrap-around columns are masked out of the statistics.
    pidx = jax.lax.broadcasted_iota(jnp.float32, (pfull, 1), 0)
    col = pidx - float(ws) * jnp.floor(pidx / float(ws))
    m = (col < float(ow)).astype(jnp.float32)
    inv_n = 1.0 / float((pfull // ws) * ow)
    ym = y * m
    mean = jnp.sum(ym, axis=0, keepdims=True) * inv_n
    ex2 = jnp.sum(ym * y, axis=0, keepdims=True) * inv_n
    var = jnp.maximum(ex2 - mean * mean, 0.0)
    y = (y - mean) * jax.lax.rsqrt(var + eps)

    y = jnp.where(y > 0, y, slope * y)
    o_ref[...] = y.astype(o_ref.dtype)


def _down_conv_in_lrelu(x_flat, w, b, *, tap_offsets, pfull, ws, ow,
                        out_dtype=jnp.bfloat16, c_tile=256):
    """x_flat: (N, L, K) bf16 flattened padded s2d tensor; w: (4K, Cout) bf16;
    b: (1, Cout) f32 -> (N, pfull, Cout)."""
    N, L, K = x_flat.shape
    Ktot, Cout = w.shape
    ct = _pick_tile(Cout, c_tile, 128)
    grid = (N, Cout // ct)
    kernel = functools.partial(
        _down_kernel, tap_offsets=tuple(tap_offsets), pfull=pfull, ws=ws,
        ow=ow, eps=1e-5, slope=0.2)
    return pl.pallas_call(
        kernel,
        out_shape=jax.ShapeDtypeStruct((N, pfull, Cout), out_dtype),
        grid_spec=pltpu.PrefetchScalarGridSpec(
            num_scalar_prefetch=0,
            grid=grid,
            in_specs=[
                pl.BlockSpec((None, L, K), lambda n, j: (n, 0, 0)),
                pl.BlockSpec((Ktot, ct), lambda n, j: (0, j)),
                pl.BlockSpec((1, ct), lambda n, j: (0, j)),
            ],
            out_specs=pl.BlockSpec((None, pfull, ct), lambda n, j: (n, 0, j)),
            scratch_shapes=[pltpu.VMEM((pfull, Ktot), x_flat.dtype)],
        ),
        compiler_params=pltpu.CompilerParams(
            dimension_semantics=("parallel", "parallel"),
            vmem_limit_bytes=_vmem_limit_bytes(),
        ),
    )(x_flat, w, b)


# --------------------------------------------------------------------------
# Kernel 3: final conv (k4, s1, bias=False, Cout=1).  Taps packed as 16
# matmul columns, then a shift-add of the 16 result columns.
# --------------------------------------------------------------------------
def _final_kernel(x_ref, w_ref, o_ref, *, tap_offsets, pfull):
    r = jnp.dot(x_ref[...], w_ref[...], preferred_element_type=jnp.float32)
    y = r[tap_offsets[0]:tap_offsets[0] + pfull, 0:1]
    for t, off in enumerate(tap_offsets[1:], start=1):
        y = y + r[off:off + pfull, t:t + 1]
    o_ref[...] = y.astype(o_ref.dtype)


def _final_conv_call(x_flat, w, *, tap_offsets, pfull):
    """x_flat: (N, L, Cin) bf16; w: (Cin, 16) bf16 -> (N, pfull, 1) f32."""
    N, L, Cin = x_flat.shape
    kernel = functools.partial(_final_kernel, tap_offsets=tuple(tap_offsets),
                               pfull=pfull)
    return pl.pallas_call(
        kernel,
        out_shape=jax.ShapeDtypeStruct((N, pfull, 1), jnp.float32),
        grid_spec=pltpu.PrefetchScalarGridSpec(
            num_scalar_prefetch=0,
            grid=(N,),
            in_specs=[
                pl.BlockSpec((None, L, Cin), lambda n: (n, 0, 0)),
                pl.BlockSpec((Cin, 16), lambda n: (0, 0)),
            ],
            out_specs=pl.BlockSpec((None, pfull, 1), lambda n: (n, 0, 0)),
        ),
        compiler_params=pltpu.CompilerParams(
            dimension_semantics=("parallel",),
            vmem_limit_bytes=_vmem_limit_bytes(),
        ),
    )(x_flat, w)


# --------------------------------------------------------------------------
# Wrapper-side layout glue (pure pad / reshape / transpose, no byte inflation
# except the review-endorsed 4x fold of the tiny layer-1 tensor).
# --------------------------------------------------------------------------
def _space_to_depth_pad(x):
    """NHWC (N,H,W,C) -> pad 1 each side -> 2x2 space-to-depth
    -> (N, H/2+1, W/2+1, 4C)."""
    N, H, W, C = x.shape
    xp = jnp.pad(x, ((0, 0), (1, 1), (1, 1), (0, 0)))
    Hs, Ws = (H + 2) // 2, (W + 2) // 2
    x2 = xp.reshape(N, Hs, 2, Ws, 2, C)
    x2 = jnp.transpose(x2, (0, 1, 3, 2, 4, 5))        # (N, Hs, Ws, pi, pj, C)
    return x2.reshape(N, Hs, Ws, 4 * C)


def _flatten_pad(x_sp, l_needed):
    """(N, A, B, C) -> (N, Lpad, C); Lpad rounded to 16 (bf16 sublane pack)."""
    N, A, B, C = x_sp.shape
    L = A * B
    lpad = ((max(l_needed, L) + 15) // 16) * 16
    xf = x_sp.reshape(N, L, C)
    return jnp.pad(xf, ((0, 0), (0, lpad - L), (0, 0)))


def _layer1(x, w, b):
    """Conv(k4,s2,p1) + LeakyReLU(0.2), no norm.  Taps folded in the wrapper
    (small tensor) so the kernel sees a lane-dense, 16*Cin-deep operand."""
    N, H, W, _ = x.shape
    OH, OW = H // 2, W // 2
    x2 = _space_to_depth_pad(x)                               # (N, OH+1, OW+1, 4Cin)
    cat = jnp.concatenate(
        [x2[:, di:di + OH, dj:dj + OW, :] for di in (0, 1) for dj in (0, 1)],
        axis=-1)                                              # (N, OH, OW, 16Cin)
    cat = cat.reshape(N, OH * OW, cat.shape[-1])
    y = _matmul_bias_lrelu(cat, w, b)                         # (N, OH*OW, Cout)
    return y.reshape(N, OH, OW, -1)


def _down_block(x, w, b):
    """Conv(k4,s2,p1) + InstanceNorm + LeakyReLU(0.2):
    (N,H,W,Cin) -> (N,H/2,W/2,Cout)."""
    # TODO(synk): emit the next layer's space-to-depth layout directly from the
    # kernel to cut the remaining pad/reshape/transpose glue between pallas_calls.
    N, H, W, _ = x.shape
    OH, OW = H // 2, W // 2
    Ws = OW + 1
    x2 = _space_to_depth_pad(x)                               # (N, OH+1, Ws, 4Cin)
    K = x2.shape[-1]
    Cout = w.shape[-1]
    # Pad the s2d channel dim (and the matching weight rows) to a multiple of
    # 128 so the in-kernel tap bands are fully lane-aligned.  No-op at real
    # sizes (K >= 256); only tiny toy tensors get padded.
    Kpad = ((K + 127) // 128) * 128
    if Kpad != K:
        x2 = jnp.pad(x2, ((0, 0), (0, 0), (0, 0), (0, Kpad - K)))
        w = jnp.pad(w.reshape(4, K, Cout), ((0, 0), (0, Kpad - K), (0, 0)))
        w = w.reshape(4 * Kpad, Cout)
    pfull = OH * Ws
    tap_offsets = [di * Ws + dj for di in (0, 1) for dj in (0, 1)]
    xf = _flatten_pad(x2, tap_offsets[-1] + pfull)
    y = _down_conv_in_lrelu(xf, w, b, tap_offsets=tap_offsets, pfull=pfull,
                            ws=Ws, ow=OW)                     # (N, pfull, Cout)
    return y.reshape(N, OH, Ws, -1)[:, :, :OW, :]             # drop wrap columns


def _final_conv(x, wf):
    """ZeroPad2d((1,0,1,0)) + Conv(k4, p1, bias=False): (N,H,W,C) -> (N,H,W,1)."""
    N, H, W, _ = x.shape
    OH, OW = H, W
    xp = jnp.pad(x, ((0, 0), (2, 1), (2, 1), (0, 0)))         # combined padding
    Wp = W + 3
    pfull = OH * Wp
    tap_offsets = [ki * Wp + kj for ki in range(4) for kj in range(4)]
    xf = _flatten_pad(xp, tap_offsets[-1] + pfull)
    y = _final_conv_call(xf, wf, tap_offsets=tap_offsets, pfull=pfull)
    return y.reshape(N, OH, Wp, 1)[:, :, :OW, :]              # drop wrap columns


# --------------------------------------------------------------------------
# Deterministic parameter init (PyTorch-style uniform(-1/sqrt(fan_in), ...)),
# rearranged into the tap-matmul layouts the kernels consume.
# --------------------------------------------------------------------------
def init_params(key, in_channels=3, out_channels=1, filters=8):
    cin0 = in_channels + out_channels
    chans = [cin0, filters, filters * 2, filters * 4, filters * 8]
    blocks = []
    for i in range(4):
        key, kw, kb = jax.random.split(key, 3)
        ci, co = chans[i], chans[i + 1]
        bound = 1.0 / math.sqrt(ci * 4 * 4)
        w = jax.random.uniform(kw, (co, ci, 4, 4), jnp.float32, -bound, bound)
        b = jax.random.uniform(kb, (co,), jnp.float32, -bound, bound)
        # (co, c, ki, kj) -> tap-concatenated rows for the s2d conv:
        #   row = (di*2+dj)*4ci + pi*2ci + pj*ci + c,  with ki = 2di+pi, kj = 2dj+pj
        w2 = w.reshape(co, ci, 2, 2, 2, 2)                   # (co, c, di, pi, dj, pj)
        w2 = jnp.transpose(w2, (2, 4, 3, 5, 1, 0))           # (di, dj, pi, pj, c, co)
        w2 = w2.reshape(16 * ci, co).astype(jnp.bfloat16)
        blocks.append({"w": w2, "b": b.reshape(1, co)})
    key, kw = jax.random.split(key)
    ci = chans[-1]
    bound = 1.0 / math.sqrt(ci * 4 * 4)
    wf = jax.random.uniform(kw, (1, ci, 4, 4), jnp.float32, -bound, bound)
    # (1, c, ki, kj) -> taps packed as 16 matmul columns: Wpack[c, ki*4+kj]
    wf = wf[0].reshape(ci, 16).astype(jnp.bfloat16)
    return {"blocks": blocks, "final_w": wf}


# --------------------------------------------------------------------------
# Forward pass (matches the nn.Sequential of the PyTorch module).
# --------------------------------------------------------------------------
def discriminator_forward(params, img_A, img_B):
    x = jnp.concatenate([img_A, img_B], axis=1)               # (N, Ctot, H, W) NCHW
    x = jnp.transpose(x, (0, 2, 3, 1)).astype(jnp.bfloat16)   # -> NHWC bf16
    blk0 = params["blocks"][0]
    x = _layer1(x, blk0["w"], blk0["b"])                      # block 1 (no norm)
    for blk in params["blocks"][1:]:
        x = _down_block(x, blk["w"], blk["b"])                # blocks 2-4
    y = _final_conv(x, params["final_w"])                     # (N, H', W', 1) f32
    return jnp.transpose(y, (0, 3, 1, 2))                     # back to NCHW


if __name__ == "__main__":
    key = jax.random.PRNGKey(0)
    kp, ka, kb = jax.random.split(key, 3)

    # Small but architecture-consistent shapes: in_channels=3, out_channels=1,
    # filters=8, batch=2, spatial=32.
    params = init_params(kp, in_channels=3, out_channels=1, filters=8)
    N, H, W = 2, 32, 32
    img_A = jax.random.normal(ka, (N, 3, H, W), jnp.float32)
    img_B = jax.random.normal(kb, (N, 1, H, W), jnp.float32)

    out = discriminator_forward(params, img_A, img_B)
    jax.block_until_ready(out)

    # 32 -> 16 -> 8 -> 4 -> 2 -> (zero-pad) -> 2x2 patch map
    assert out.shape == (N, 1, 2, 2), out.shape
    assert out.dtype == jnp.float32
    print("KERNEL_OK")
</pallas_src>

<mosaic_0001>
module attributes {stable_mosaic.version = 11 : i64} {
  func.func @_mm_act_kernel(%arg0: i32, %arg1: i32, %arg2: i32, %arg3: memref<1x256x64xbf16, #tpu.memory_space<vmem>>, %arg4: memref<64x8xbf16, #tpu.memory_space<vmem>>, %arg5: memref<1x8xf32, #tpu.memory_space<vmem>>, %arg6: memref<1x256x8xbf16, #tpu.memory_space<vmem>>) attributes {dimension_semantics = [#tpu.dimension_semantics<parallel>, #tpu.dimension_semantics<parallel>, #tpu.dimension_semantics<parallel>], iteration_bounds = array<i64: 2, 1, 1>, scalar_prefetch = 0 : i64, scratch_operands = 0 : i64, tpu.core_type = #tpu.core_type<tc>, window_params = [{transform_indices = @transform_0, window_bounds = array<i64: 1, 256, 64>}, {transform_indices = @transform_1, window_bounds = array<i64: 64, 8>}, {transform_indices = @transform_2, window_bounds = array<i64: 1, 8>}, {transform_indices = @transform_3, window_bounds = array<i64: 1, 256, 8>}]} {
    %c0 = arith.constant 0 : index
    %c0_0 = arith.constant 0 : index
    %c0_1 = arith.constant 0 : index
    %0 = vector.load %arg3[%c0, %c0_0, %c0_1] : memref<1x256x64xbf16, #tpu.memory_space<vmem>>, vector<1x256x64xbf16>
    %1 = vector.shape_cast %0 : vector<1x256x64xbf16> to vector<256x64xbf16>
    %c0_2 = arith.constant 0 : index
    %c0_3 = arith.constant 0 : index
    %2 = vector.load %arg4[%c0_2, %c0_3] : memref<64x8xbf16, #tpu.memory_space<vmem>>, vector<64x8xbf16>
    %cst = arith.constant dense<0.000000e+00> : vector<256x8xf32>
    %3 = tpu.matmul %1, %2, %cst {dimension_numbers = #tpu.dot_dimension_numbers<[1], [0], [0], [1], [0, 0, 1, 1], [], []>} : vector<256x64xbf16>, vector<64x8xbf16>, vector<256x8xf32> -> vector<256x8xf32>
    %c0_4 = arith.constant 0 : index
    %c0_5 = arith.constant 0 : index
    %4 = vector.load %arg5[%c0_4, %c0_5] : memref<1x8xf32, #tpu.memory_space<vmem>>, vector<1x8xf32>
    %5 = vector.broadcast %4 : vector<1x8xf32> to vector<256x8xf32>
    %6 = arith.addf %3, %5 : vector<256x8xf32>
    %cst_6 = arith.constant 0.000000e+00 : f32
    %7 = vector.broadcast %cst_6 : f32 to vector<256x8xf32>
    %8 = arith.cmpf ogt, %6, %7 : vector<256x8xf32>
    %cst_7 = arith.constant 2.000000e-01 : f32
    %9 = vector.broadcast %cst_7 : f32 to vector<256x8xf32>
    %10 = arith.mulf %9, %6 : vector<256x8xf32>
    %11 = arith.select %8, %6, %10 : vector<256x8xi1>, vector<256x8xf32>
    %12 = arith.truncf %11 : vector<256x8xf32> to vector<256x8xbf16>
    %c0_8 = arith.constant 0 : index
    %c0_9 = arith.constant 0 : index
    %c0_10 = arith.constant 0 : index
    %13 = vector.load %arg6[%c0_8, %c0_9, %c0_10] : memref<1x256x8xbf16, #tpu.memory_space<vmem>>, vector<1x256x8xbf16>
    %14 = vector.shape_cast %13 : vector<1x256x8xbf16> to vector<256x8xbf16>
    %15 = vector.shape_cast %12 : vector<256x8xbf16> to vector<1x256x8xbf16>
    tpu.vector_store %arg6[%c0_8, %c0_9, %c0_10], %15 {strides = array<i32>} : memref<1x256x8xbf16, #tpu.memory_space<vmem>>, vector<1x256x8xbf16>,
    return
  }
  func.func @transform_0(%arg0: i32, %arg1: i32, %arg2: i32) -> (i32, i32, i32) {
    %c0_i32 = arith.constant 0 : i32
    %c0_i32_0 = arith.constant 0 : i32
    return %arg0, %arg1, %c0_i32 : i32, i32, i32
  }
  func.func @transform_1(%arg0: i32, %arg1: i32, %arg2: i32) -> (i32, i32) {
    %c0_i32 = arith.constant 0 : i32
    %c0_i32_0 = arith.constant 0 : i32
    return %c0_i32, %arg2 : i32, i32
  }
  func.func @transform_2(%arg0: i32, %arg1: i32, %arg2: i32) -> (i32, i32) {
    %c0_i32 = arith.constant 0 : i32
    %c0_i32_0 = arith.constant 0 : i32
    return %c0_i32, %arg2 : i32, i32
  }
  func.func @transform_3(%arg0: i32, %arg1: i32, %arg2: i32) -> (i32, i32, i32) {
    %c0_i32 = arith.constant 0 : i32
    return %arg0, %arg1, %arg2 : i32, i32, i32
  }
}

</mosaic_0001>

<llo_original>
// kernel: tpu_custom_call.1
$region0: #{tpu_custom_call.1}
  #allocation0 [shape = 'u32[]', space=smem, size = 0x4, offset = 0x4, fixed_abs, tag = 'smem constant byte address 0x4 - core index']
  #allocation1 [shape = 'u32[72,128]{1,0:T(1,128)}', space=vmem, size = 0x9000, scoped, tag = 'internal scratch']
  %s0 = inlined_call_operand.vmem [shape: bf16[2,256,64], index: 0, kind: input, shape index: {}]
  %s1 = inlined_call_operand.vmem [shape: bf16[64,8], index: 1, kind: input, shape index: {}]
  %s2 = inlined_call_operand.vmem [shape: f32[1,8], index: 2, kind: input, shape index: {}]
  %s3 = inlined_call_operand.vmem [shape: bf16[2,256,8], index: 3, kind: output, shape index: {}]
  %s4 = sld [smem:[#allocation0]]
  $region45: #{tpu_custom_call.1} parent=0
    _
  %s6 = ssub.s32 1, %s4
  %s7 = scalar_select 0, %s6, %s4
  loop: start=0, step=1, limit=4
  $region2: #{tpu_custom_call.1} parent=0 // loop_pre_header
    _
  $region3: #{tpu_custom_call.1} parent=0 // loop_header
    %s9 = sphi 0, %s13
    %p10 = scmp.ge.s32.totalorder %s9, 4
    %s16 = sphi 0, %s35
    %s17 = sphi 0, %s31
    %s18 = sphi 0, %s27
    %s19 = sphi 0, %s16
    %s20 = sphi 0, %s17
    %s21 = sphi 0, %s18
    %s22 = sphi 0, %s19
    %s23 = sphi 0, %s20
    %s24 = sphi 0, %s21
    %s40 = sphi 0, %s42
    %s43 = sphi 0, %s40
    %s44 = sphi 0, %s43
    %s60 = sphi 0, %s44
    %s66 = sphi 0, %s68
    %s69 = sphi 0, %s66
    %s70 = sphi 0, %s69
    %s86 = sphi 0, %s70
    %s92 = sphi 0, %s94
    %s95 = sphi 0, %s92
    %s96 = sphi 0, %s95
    %s112 = sphi 0, %s96
    %s122 = sphi 0, %s124
    %s125 = sphi 0, %s122
    %s126 = sphi 0, %s125
    %s142 = sphi 0, %s126
  $region4: #{tpu_custom_call.1} parent=0 // loop_header_branch
    %12 = sbr.rel (%p10) target = $region8
  $region5: #{tpu_custom_call.1} parent=0 // loop_body
    %s14 = ssub.s32 %s9, 1
    %s15 = ssub.s32 %s9, 2
    %s25 = sadd.s32 1, %s18
    %p26 = scmp.ge.s32.totalorder %s25, 1
    %s27 = scalar_select %p26, 0, %s25
    %s28 = sadd.s32 1, %s17
    %s29 = scalar_select %p26, %s28, %s17
    %p30 = scmp.ge.s32.totalorder %s29, 1
    %s31 = scalar_select %p30, 0, %s29
    %s32 = sadd.s32 1, %s16
    %s33 = scalar_select %p30, %s32, %s16
    %p34 = scmp.ge.s32.totalorder %s33, 2
    %s35 = scalar_select %p34, 0, %s33
    %s36 = ssub.s32 %s16, %s35
    %s37 = ssub.s32 %s17, %s31
    %s38 = sor.u32 %s36, %s37
    %p39 = scmp.eq.s32.totalorder %s38, 0
    %s41 = sadd.s32 %s40, 1
    %s42 = scalar_select %p39, %s40, %s41
    %p45 = pneg %p39
    %p46 = scmp.eq.s32.totalorder %s9, 1
    %p47 = por %p45, %p46
    %p48 = scmp.ne.s32.totalorder %s40, %s43
    %p49 = scmp.eq.s32.totalorder %s9, 0
    %p50 = por %p48, %p49
    %p51 = scmp.ne.s32.totalorder %s40, %s43
    %p52 = scmp.eq.s32.totalorder %s14, 1
    %p53 = por %p51, %p52
    %p54 = scmp.ne.s32.totalorder %s43, %s44
    %p55 = scmp.eq.s32.totalorder %s14, 0
    %p56 = por %p54, %p55
    %p57 = scmp.ne.s32.totalorder %s43, %s44
    %p58 = scmp.eq.s32.totalorder %s15, 1
    %p59 = por %p57, %p58
    %p61 = scmp.ne.s32.totalorder %s44, %s60
    %p62 = scmp.eq.s32.totalorder %s15, 0
    %p63 = por %p61, %p62
    %s64 = ssub.s32 %s18, %s27
    %p65 = scmp.eq.s32.totalorder %s64, 0
    %s67 = sadd.s32 %s66, 1
    %s68 = scalar_select %p65, %s66, %s67
    %p71 = pneg %p65
    %p72 = scmp.eq.s32.totalorder %s9, 1
    %p73 = por %p71, %p72
    %p74 = scmp.ne.s32.totalorder %s66, %s69
    %p75 = scmp.eq.s32.totalorder %s9, 0
    %p76 = por %p74, %p75
    %p77 = scmp.ne.s32.totalorder %s66, %s69
    %p78 = scmp.eq.s32.totalorder %s14, 1
    %p79 = por %p77, %p78
    %p80 = scmp.ne.s32.totalorder %s69, %s70
    %p81 = scmp.eq.s32.totalorder %s14, 0
    %p82 = por %p80, %p81
    %p83 = scmp.ne.s32.totalorder %s69, %s70
    %p84 = scmp.eq.s32.totalorder %s15, 1
    %p85 = por %p83, %p84
    %p87 = scmp.ne.s32.totalorder %s70, %s86
    %p88 = scmp.eq.s32.totalorder %s15, 0
    %p89 = por %p87, %p88
    %s90 = ssub.s32 %s18, %s27
    %p91 = scmp.eq.s32.totalorder %s90, 0
    %s93 = sadd.s32 %s92, 1
    %s94 = scalar_select %p91, %s92, %s93
    %p97 = pneg %p91
    %p98 = scmp.eq.s32.totalorder %s9, 1
    %p99 = por %p97, %p98
    %p100 = scmp.ne.s32.totalorder %s92, %s95
    %p101 = scmp.eq.s32.totalorder %s9, 0
    %p102 = por %p100, %p101
    %p103 = scmp.ne.s32.totalorder %s92, %s95
    %p104 = scmp.eq.s32.totalorder %s14, 1
    %p105 = por %p103, %p104
    %p106 = scmp.ne.s32.totalorder %s95, %s96
    %p107 = scmp.eq.s32.totalorder %s14, 0
    %p108 = por %p106, %p107
    %p109 = scmp.ne.s32.totalorder %s95, %s96
    %p110 = scmp.eq.s32.totalorder %s15, 1
    %p111 = por %p109, %p110
    %p113 = scmp.ne.s32.totalorder %s96, %s112
    %p114 = scmp.eq.s32.totalorder %s15, 0
    %p115 = por %p113, %p114
    %s116 = ssub.s32 %s16, %s35
    %s117 = ssub.s32 %s17, %s31
    %s118 = sor.u32 %s116, %s117
    %s119 = ssub.s32 %s18, %s27
    %s120 = sor.u32 %s118, %s119
    %p121 = scmp.eq.s32.totalorder %s120, 0
    %s123 = sadd.s32 %s122, 1
    %s124 = scalar_select %p121, %s122, %s123
    %p127 = pneg %p121
    %p128 = scmp.eq.s32.totalorder %s9, 1
    %p129 = por %p127, %p128
    %p130 = scmp.ne.s32.totalorder %s122, %s125
    %p131 = scmp.eq.s32.totalorder %s9, 0
    %p132 = por %p130, %p131
    %p133 = scmp.ne.s32.totalorder %s122, %s125
    %p134 = scmp.eq.s32.totalorder %s14, 1
    %p135 = por %p133, %p134
    %p136 = scmp.ne.s32.totalorder %s125, %s126
    %p137 = scmp.eq.s32.totalorder %s14, 0
    %p138 = por %p136, %p137
    %p139 = scmp.ne.s32.totalorder %s125, %s126
    %p140 = scmp.eq.s32.totalorder %s15, 1
    %p141 = por %p139, %p140
    %p143 = scmp.ne.s32.totalorder %s126, %s142
    %p144 = scmp.eq.s32.totalorder %s15, 0
    %p145 = por %p143, %p144
    %p146 = scmp.le.s32.totalorder 1, %s9
    %p147 = scmp.lt.s32.totalorder %s9, 3
    %p148 = pnand %p146, %p147
    %p149 = pneg %p148
    // Predicated region
    $region9: #{tpu_custom_call.1} parent=5 // pred_check
      _
    $region10: #{tpu_custom_call.1} parent=5 // pred_check_branch
      %151 = sbr.rel (%p148) target = $region12
    $region11: #{tpu_custom_call.1} parent=5 // pred_region
      %s152 = ssub.s32 %s9, 1
      // Predicated region
      $region13: #{tpu_custom_call.1} parent=11 // pred_check
        %p153 = pneg %p82
      $region14: #{tpu_custom_call.1} parent=11 // pred_check_branch
        %155 = sbr.rel (%p153) target = $region16
      $region15: #{tpu_custom_call.1} parent=11 // pred_region
        %p156 = scmp.lt.s32.totalorder %s21, 0
        %s157 = scalar_select %p156, %s21, 0
        %s158 = smul.addr %s157, 4
        %s159 = scalar_lea.vmem %s1, %s158
      $region16: #{tpu_custom_call.1} parent=11 // pred_fallthru
        _
      // Predicated region
      $region17: #{tpu_custom_call.1} parent=11 // pred_check
        %p160 = pneg %p108
      $region18: #{tpu_custom_call.1} parent=11 // pred_check_branch
        %162 = sbr.rel (%p160) target = $region20
      $region19: #{tpu_custom_call.1} parent=11 // pred_region
        %p163 = scmp.lt.s32.totalorder %s21, 0
        %s164 = scalar_select %p163, %s21, 0
        %s165 = scalar_lea.vmem %s2, %s164
      $region20: #{tpu_custom_call.1} parent=11 // pred_fallthru
        _
    $region12: #{tpu_custom_call.1} parent=5 // pred_fallthru
      _
    %p166 = scmp.lt.s32.totalorder %s9, 2
    // Predicated region
    $region21: #{tpu_custom_call.1} parent=5 // pred_check
      %p167 = pneg %p166
    $region22: #{tpu_custom_call.1} parent=5 // pred_check_branch
      %169 = sbr.rel (%p167) target = $region24
    $region23: #{tpu_custom_call.1} parent=5 // pred_region
      // Predicated region
      $region25: #{tpu_custom_call.1} parent=23 // pred_check
        %p170 = pneg %p50
      $region26: #{tpu_custom_call.1} parent=23 // pred_check_branch
        %172 = sbr.rel (%p170) target = $region28
      $region27: #{tpu_custom_call.1} parent=23 // pred_region
        %s173 = smul.u32 32, %s17
        %p174 = scmp.lt.s32.totalorder %s16, 1
        %s175 = scalar_select %p174, %s16, 1
        %p176 = scmp.lt.s32.totalorder %s173, 31
        %s177 = scalar_select %p176, %s173, 31
        %s178 = smul.addr %s175, 32
        %s179 = sadd.s32 %s177, %s178
        %s180 = smul.addr %s179, 4
        %s181 = scalar_lea.vmem %s0, %s180
        %s182 = smul.u32 32, %s17
      $region28: #{tpu_custom_call.1} parent=23 // pred_fallthru
        _
    $region24: #{tpu_custom_call.1} parent=5 // pred_fallthru
      _
    %p183 = scmp.le.s32.totalorder 1, %s9
    %p184 = scmp.lt.s32.totalorder %s9, 3
    %p185 = pnand %p183, %p184
    %p186 = pneg %p185
    // Predicated region
    $region29: #{tpu_custom_call.1} parent=5 // pred_check
      _
    $region30: #{tpu_custom_call.1} parent=5 // pred_check_branch
      %188 = sbr.rel (%p185) target = $region32
    $region31: #{tpu_custom_call.1} parent=5 // pred_region
      %s189 = ssub.s32 %s9, 1
      %s190 = smul.u32 32, %s20
      %p191 = scmp.lt.s32.totalorder %s19, 1
      %s192 = scalar_select %p191, %s19, 1
      %p193 = scmp.lt.s32.totalorder %s190, 31
      %s194 = scalar_select %p193, %s190, 31
      %s195 = smul.addr %s192, 32
      %s196 = sadd.s32 %s194, %s195
      %s197 = smul.addr %s196, 4
      %s198 = scalar_lea.vmem %s0, %s197
      %p199 = pneg %p56
      %p200 = pneg %p53
      %p201 = scmp.lt.s32.totalorder %s21, 0
      %s202 = scalar_select %p201, %s21, 0
      %s203 = smul.addr %s202, 4
      %s204 = scalar_lea.vmem %s1, %s203
      %p205 = pneg %p82
      %p206 = pneg %p79
      %p207 = scmp.lt.s32.totalorder %s21, 0
      %s208 = scalar_select %p207, %s21, 0
      %s209 = scalar_lea.vmem %s2, %s208
      %p210 = pneg %p108
      %p211 = pneg %p105
      %p212 = pneg %p138
      %p213 = pneg %p135
      %s214 = smul.u32 32, %s20
      %p215 = scmp.lt.s32.totalorder %s19, 1
      %s216 = scalar_select %p215, %s19, 1
      %p217 = scmp.lt.s32.totalorder %s214, 31
      %s218 = scalar_select %p217, %s214, 31
      %p219 = scmp.lt.s32.totalorder %s21, 0
      %s220 = scalar_select %p219, %s21, 0
      %s221 = sadd.s32 %s220, %s218
      %s222 = smul.addr %s216, 32
      %s223 = sadd.s32 %s221, %s222
      %s224 = smul.addr %s223, 4
      %s225 = scalar_lea.vmem %s3, %s224
      %s226 = smul.u32 32, %s20
      %p227 = scmp.lt.s32.totalorder %s19, 1
      %s228 = scalar_select %p227, %s19, 1
      %p229 = scmp.lt.s32.totalorder %s226, 31
      %s230 = scalar_select %p229, %s226, 31
      %s231 = smul.addr %s228, 32
      %s232 = sadd.s32 %s230, %s231
      %s233 = smul.addr %s232, 4
      %s234 = scalar_lea.vmem %s0, %s233
      %s235 = smul.u32 32, %s20
      %p236 = scmp.lt.s32.totalorder %s21, 0
      %s237 = scalar_select %p236, %s21, 0
      %s238 = smul.addr %s237, 4
      %s239 = scalar_lea.vmem %s1, %s238
      %p240 = scmp.lt.s32.totalorder %s21, 0
      %s241 = scalar_select %p240, %s21, 0
      %s242 = scalar_lea.vmem %s2, %s241
      %s243 = smul.u32 32, %s20
      %p244 = scmp.lt.s32.totalorder %s19, 1
      %s245 = scalar_select %p244, %s19, 1
      %p246 = scmp.lt.s32.totalorder %s243, 31
      %s247 = scalar_select %p246, %s243, 31
      %p248 = scmp.lt.s32.totalorder %s21, 0
      %s249 = scalar_select %p248, %s21, 0
      %s250 = sadd.s32 %s249, %s247
      %s251 = smul.addr %s245, 32
      %s252 = sadd.s32 %s250, %s251
      %s253 = smul.addr %s252, 4
      %s254 = scalar_lea.vmem %s3, %s253
      %s255 = smul.u32 32, %s20
      %v257 = vld [vmem:[%s234] sm:$0xf]
      %v258 = vld [vmem:[%s234 + $0x4] sm:$0xf]
      %v259 = vld [vmem:[%s234 + $0x8] sm:$0xf]
      %v260 = vld [vmem:[%s234 + $0xc] sm:$0xf]
      %v261 = vld [vmem:[%s234 + $0x10] sm:$0xf]
      %v262 = vld [vmem:[%s234 + $0x14] sm:$0xf]
      %v263 = vld [vmem:[%s234 + $0x18] sm:$0xf]
      %v264 = vld [vmem:[%s234 + $0x1c] sm:$0xf]
      %v265 = vld [vmem:[%s234 + $0x20] sm:$0xf]
      %v266 = vld [vmem:[%s234 + $0x24] sm:$0xf]
      %v267 = vld [vmem:[%s234 + $0x28] sm:$0xf]
      %v268 = vld [vmem:[%s234 + $0x2c] sm:$0xf]
      %v269 = vld [vmem:[%s234 + $0x30] sm:$0xf]
      %v270 = vld [vmem:[%s234 + $0x34] sm:$0xf]
      %v271 = vld [vmem:[%s234 + $0x38] sm:$0xf]
      %v272 = vld [vmem:[%s234 + $0x3c] sm:$0xf]
      %v273 = vld [vmem:[%s234 + $0x40] sm:$0xf]
      %v274 = vld [vmem:[%s234 + $0x44] sm:$0xf]
      %v275 = vld [vmem:[%s234 + $0x48] sm:$0xf]
      %v276 = vld [vmem:[%s234 + $0x4c] sm:$0xf]
      %v277 = vld [vmem:[%s234 + $0x50] sm:$0xf]
      %v278 = vld [vmem:[%s234 + $0x54] sm:$0xf]
      %v279 = vld [vmem:[%s234 + $0x58] sm:$0xf]
      %v280 = vld [vmem:[%s234 + $0x5c] sm:$0xf]
      %v281 = vld [vmem:[%s234 + $0x60] sm:$0xf]
      %v282 = vld [vmem:[%s234 + $0x64] sm:$0xf]
      %v283 = vld [vmem:[%s234 + $0x68] sm:$0xf]
      %v284 = vld [vmem:[%s234 + $0x6c] sm:$0xf]
      %v285 = vld [vmem:[%s234 + $0x70] sm:$0xf]
      %v286 = vld [vmem:[%s234 + $0x74] sm:$0xf]
      %v287 = vld [vmem:[%s234 + $0x78] sm:$0xf]
      %v288 = vld [vmem:[%s234 + $0x7c] sm:$0xf]
      %v289 = vld [vmem:[%s239] sm:$0xf]
      %v290 = vld [vmem:[%s239 + $0x4] sm:$0xf]
      %v291 = vld [vmem:[%s239 + $0x8] sm:$0xf]
      %v292 = vld [vmem:[%s239 + $0xc] sm:$0xf]
      %v293 = vld [vmem:[%s239 + $0x10] sm:$0xf]
      %v294 = vld [vmem:[%s239 + $0x14] sm:$0xf]
      %v295 = vld [vmem:[%s239 + $0x18] sm:$0xf]
      %v296 = vld [vmem:[%s239 + $0x1c] sm:$0xf]
      %v297 = vld [vmem:[%s242] sm:$0x1]
      %v299 = vperm.slane %v297, 0
      %v333 = vunpack.c.l.b16 %v257
      %v334 = vunpack.c.l.b16 %v258
      %v335 = vunpack.c.l.b16 %v259
      %v336 = vunpack.c.l.b16 %v260
      %v337 = vunpack.c.l.b16 %v261
      %v338 = vunpack.c.l.b16 %v262
      %v339 = vunpack.c.l.b16 %v263
      %v340 = vunpack.c.l.b16 %v264
      %v341 = vunpack.c.l.b16 %v265
      %v342 = vunpack.c.l.b16 %v266
      %v343 = vunpack.c.l.b16 %v267
      %v344 = vunpack.c.l.b16 %v268
      %v345 = vunpack.c.l.b16 %v269
      %v346 = vunpack.c.l.b16 %v270
      %v347 = vunpack.c.l.b16 %v271
      %v348 = vunpack.c.l.b16 %v272
      %v349 = vunpack.c.l.b16 %v273
      %v350 = vunpack.c.l.b16 %v274
      %v351 = vunpack.c.l.b16 %v275
      %v352 = vunpack.c.l.b16 %v276
      %v353 = vunpack.c.l.b16 %v277
      %v354 = vunpack.c.l.b16 %v278
      %v355 = vunpack.c.l.b16 %v279
      %v356 = vunpack.c.l.b16 %v280
      %v357 = vunpack.c.l.b16 %v281
      %v358 = vunpack.c.l.b16 %v282
      %v359 = vunpack.c.l.b16 %v283
      %v360 = vunpack.c.l.b16 %v284
      %v361 = vunpack.c.l.b16 %v285
      %v362 = vunpack.c.l.b16 %v286
      %v363 = vunpack.c.l.b16 %v287
      %v364 = vunpack.c.l.b16 %v288
      %v365 = vpack.c.b16 %v334, %v333
      %v366 = vpack.c.b16 %v336, %v335
      %v367 = vpack.c.b16 %v338, %v337
      %v368 = vpack.c.b16 %v340, %v339
      %v369 = vpack.c.b16 %v342, %v341
      %v370 = vpack.c.b16 %v344, %v343
      %v371 = vpack.c.b16 %v346, %v345
      %v372 = vpack.c.b16 %v348, %v347
      %v373 = vpack.c.b16 %v350, %v349
      %v374 = vpack.c.b16 %v352, %v351
      %v375 = vpack.c.b16 %v354, %v353
      %v376 = vpack.c.b16 %v356, %v355
      %v377 = vpack.c.b16 %v358, %v357
      %v378 = vpack.c.b16 %v360, %v359
      %v379 = vpack.c.b16 %v362, %v361
      %v380 = vpack.c.b16 %v364, %v363
      %v389 = vunpack.c.l.b16 %v289
      %v390 = vunpack.c.l.b16 %v290
      %v391 = vunpack.c.l.b16 %v291
      %v392 = vunpack.c.l.b16 %v292
      %v393 = vunpack.c.l.b16 %v293
      %v394 = vunpack.c.l.b16 %v294
      %v395 = vunpack.c.l.b16 %v295
      %v396 = vunpack.c.l.b16 %v296
      %v397 = vpack.c.b16 %v390, %v389
      %v398 = vpack.c.b16 %v392, %v391
      %v399 = vpack.c.b16 %v394, %v393
      %v400 = vpack.c.b16 %v396, %v395
      %vm405 = vcmask 523264
      %v407 = vsel %vm405, %v365, 0
      %v410 = vsel %vm405, %v366, 0
      %v413 = vsel %vm405, %v367, 0
      %v416 = vsel %vm405, %v368, 0
      %v419 = vsel %vm405, %v369, 0
      %v422 = vsel %vm405, %v370, 0
      %v425 = vsel %vm405, %v371, 0
      %v428 = vsel %vm405, %v372, 0
      %v431 = vsel %vm405, %v373, 0
      %v434 = vsel %vm405, %v374, 0
      %v437 = vsel %vm405, %v375, 0
      %v440 = vsel %vm405, %v376, 0
      %v443 = vsel %vm405, %v377, 0
      %v446 = vsel %vm405, %v378, 0
      %v449 = vsel %vm405, %v379, 0
      %v452 = vsel %vm405, %v380, 0
      %454 = vmatpush.bf16.msra.mxu0 0
      %455 = vmatpush.bf16.msra.mxu0 0
      %456 = vmatpush.bf16.msra.mxu0 0
      %457 = vmatpush.bf16.msra.mxu0 0
      %458 = vmatpush.bf16.msra.mxu0 %v400
      %459 = vmatpush.bf16.msra.mxu0 %v399
      %460 = vmatpush.bf16.msra.mxu0 %v398
      %461 = vmatpush.bf16.msra.mxu0 %v397
      %462 = vmatmul.bf16.gmra.mxu0 %v407
      %v463 = vpop.f32.mrf.mxu0
      %v464 = vadd.f32 %v299, %v463
      %v465 = vpop.f32.mrf.mxu0
      %v466 = vadd.f32 %v299, %v465
      %467 = vmatmul.bf16.gmra.mxu0 %v410
      %v468 = vpop.f32.mrf.mxu0
      %v469 = vadd.f32 %v299, %v468
      %v470 = vpop.f32.mrf.mxu0
      %v471 = vadd.f32 %v299, %v470
      %472 = vmatmul.bf16.gmra.mxu0 %v413
      %v473 = vpop.f32.mrf.mxu0
      %v474 = vadd.f32 %v299, %v473
      %v475 = vpop.f32.mrf.mxu0
      %v476 = vadd.f32 %v299, %v475
      %477 = vmatmul.bf16.gmra.mxu0 %v416
      %v478 = vpop.f32.mrf.mxu0
      %v479 = vadd.f32 %v299, %v478
      %v480 = vpop.f32.mrf.mxu0
      %v481 = vadd.f32 %v299, %v480
      %482 = vmatmul.bf16.gmra.mxu0 %v419
      %v483 = vpop.f32.mrf.mxu0
      %v484 = vadd.f32 %v299, %v483
      %v485 = vpop.f32.mrf.mxu0
      %v486 = vadd.f32 %v299, %v485
      %487 = vmatmul.bf16.gmra.mxu0 %v422
      %v488 = vpop.f32.mrf.mxu0
      %v489 = vadd.f32 %v299, %v488
      %v490 = vpop.f32.mrf.mxu0
      %v491 = vadd.f32 %v299, %v490
      %492 = vmatmul.bf16.gmra.mxu0 %v425
      %v493 = vpop.f32.mrf.mxu0
      %v494 = vadd.f32 %v299, %v493
      %v495 = vpop.f32.mrf.mxu0
      %v496 = vadd.f32 %v299, %v495
      %497 = vmatmul.bf16.gmra.mxu0 %v428
      %v498 = vpop.f32.mrf.mxu0
      %v499 = vadd.f32 %v299, %v498
      %v500 = vpop.f32.mrf.mxu0
      %v501 = vadd.f32 %v299, %v500
      %502 = vmatmul.bf16.gmra.mxu0 %v431
      %v503 = vpop.f32.mrf.mxu0
      %v504 = vadd.f32 %v299, %v503
      %v505 = vpop.f32.mrf.mxu0
      %v506 = vadd.f32 %v299, %v505
      %507 = vmatmul.bf16.gmra.mxu0 %v434
      %v508 = vpop.f32.mrf.mxu0
      %v509 = vadd.f32 %v299, %v508
      %v510 = vpop.f32.mrf.mxu0
      %v511 = vadd.f32 %v299, %v510
      %512 = vmatmul.bf16.gmra.mxu0 %v437
      %v513 = vpop.f32.mrf.mxu0
      %v514 = vadd.f32 %v299, %v513
      %v515 = vpop.f32.mrf.mxu0
      %v516 = vadd.f32 %v299, %v515
      %517 = vmatmul.bf16.gmra.mxu0 %v440
      %v518 = vpop.f32.mrf.mxu0
      %v519 = vadd.f32 %v299, %v518
      %v520 = vpop.f32.mrf.mxu0
      %v521 = vadd.f32 %v299, %v520
      %522 = vmatmul.bf16.gmra.mxu0 %v443
      %v523 = vpop.f32.mrf.mxu0
      %v524 = vadd.f32 %v299, %v523
      %v525 = vpop.f32.mrf.mxu0
      %v526 = vadd.f32 %v299, %v525
      %527 = vmatmul.bf16.gmra.mxu0 %v446
      %v528 = vpop.f32.mrf.mxu0
      %v529 = vadd.f32 %v299, %v528
      %v530 = vpop.f32.mrf.mxu0
      %v531 = vadd.f32 %v299, %v530
      %532 = vmatmul.bf16.gmra.mxu0 %v449
      %v533 = vpop.f32.mrf.mxu0
      %v534 = vadd.f32 %v299, %v533
      %v535 = vpop.f32.mrf.mxu0
      %v536 = vadd.f32 %v299, %v535
      %537 = vmatmul.bf16.gmra.mxu0 %v452
      %v538 = vpop.f32.mrf.mxu0
      %v539 = vadd.f32 %v299, %v538
      %v540 = vpop.f32.mrf.mxu0
      %v541 = vadd.f32 %v299, %v540
      %542 = vdwg.mxu0
      %vm543 = vcmp.gt.f32.partialorder %v464, 0.0
      %vm544 = vcmp.gt.f32.partialorder %v466, 0.0
      %vm545 = vcmp.gt.f32.partialorder %v469, 0.0
      %vm546 = vcmp.gt.f32.partialorder %v471, 0.0
      %vm547 = vcmp.gt.f32.partialorder %v474, 0.0
      %vm548 = vcmp.gt.f32.partialorder %v476, 0.0
      %vm549 = vcmp.gt.f32.partialorder %v479, 0.0
      %vm550 = vcmp.gt.f32.partialorder %v481, 0.0
      %vm551 = vcmp.gt.f32.partialorder %v484, 0.0
      %vm552 = vcmp.gt.f32.partialorder %v486, 0.0
      %vm553 = vcmp.gt.f32.partialorder %v489, 0.0
      %vm554 = vcmp.gt.f32.partialorder %v491, 0.0
      %vm555 = vcmp.gt.f32.partialorder %v494, 0.0
      %vm556 = vcmp.gt.f32.partialorder %v496, 0.0
      %vm557 = vcmp.gt.f32.partialorder %v499, 0.0
      %vm558 = vcmp.gt.f32.partialorder %v501, 0.0
      %vm559 = vcmp.gt.f32.partialorder %v504, 0.0
      %vm560 = vcmp.gt.f32.partialorder %v506, 0.0
      %vm561 = vcmp.gt.f32.partialorder %v509, 0.0
      %vm562 = vcmp.gt.f32.partialorder %v511, 0.0
      %vm563 = vcmp.gt.f32.partialorder %v514, 0.0
      %vm564 = vcmp.gt.f32.partialorder %v516, 0.0
      %vm565 = vcmp.gt.f32.partialorder %v519, 0.0
      %vm566 = vcmp.gt.f32.partialorder %v521, 0.0
      %vm567 = vcmp.gt.f32.partialorder %v524, 0.0
      %vm568 = vcmp.gt.f32.partialorder %v526, 0.0
      %vm569 = vcmp.gt.f32.partialorder %v529, 0.0
      %vm570 = vcmp.gt.f32.partialorder %v531, 0.0
      %vm571 = vcmp.gt.f32.partialorder %v534, 0.0
      %vm572 = vcmp.gt.f32.partialorder %v536, 0.0
      %vm573 = vcmp.gt.f32.partialorder %v539, 0.0
      %vm574 = vcmp.gt.f32.partialorder %v541, 0.0
      %v575 = vmul.f32 %v464, 0.2
      %v576 = vmul.f32 %v466, 0.2
      %v577 = vmul.f32 %v469, 0.2
      %v578 = vmul.f32 %v471, 0.2
      %v579 = vmul.f32 %v474, 0.2
      %v580 = vmul.f32 %v476, 0.2
      %v581 = vmul.f32 %v479, 0.2
      %v582 = vmul.f32 %v481, 0.2
      %v583 = vmul.f32 %v484, 0.2
      %v584 = vmul.f32 %v486, 0.2
      %v585 = vmul.f32 %v489, 0.2
      %v586 = vmul.f32 %v491, 0.2
      %v587 = vmul.f32 %v494, 0.2
      %v588 = vmul.f32 %v496, 0.2
      %v589 = vmul.f32 %v499, 0.2
      %v590 = vmul.f32 %v501, 0.2
      %v591 = vmul.f32 %v504, 0.2
      %v592 = vmul.f32 %v506, 0.2
      %v593 = vmul.f32 %v509, 0.2
      %v594 = vmul.f32 %v511, 0.2
      %v595 = vmul.f32 %v514, 0.2
      %v596 = vmul.f32 %v516, 0.2
      %v597 = vmul.f32 %v519, 0.2
      %v598 = vmul.f32 %v521, 0.2
      %v599 = vmul.f32 %v524, 0.2
      %v600 = vmul.f32 %v526, 0.2
      %v601 = vmul.f32 %v529, 0.2
      %v602 = vmul.f32 %v531, 0.2
      %v603 = vmul.f32 %v534, 0.2
      %v604 = vmul.f32 %v536, 0.2
      %v605 = vmul.f32 %v539, 0.2
      %v606 = vmul.f32 %v541, 0.2
      %v607 = vsel %vm543, %v464, %v575
      %v608 = vsel %vm544, %v466, %v576
      %v609 = vsel %vm545, %v469, %v577
      %v610 = vsel %vm546, %v471, %v578
      %v611 = vsel %vm547, %v474, %v579
      %v612 = vsel %vm548, %v476, %v580
      %v613 = vsel %vm549, %v479, %v581
      %v614 = vsel %vm550, %v481, %v582
      %v615 = vsel %vm551, %v484, %v583
      %v616 = vsel %vm552, %v486, %v584
      %v617 = vsel %vm553, %v489, %v585
      %v618 = vsel %vm554, %v491, %v586
      %v619 = vsel %vm555, %v494, %v587
      %v620 = vsel %vm556, %v496, %v588
      %v621 = vsel %vm557, %v499, %v589
      %v622 = vsel %vm558, %v501, %v590
      %v623 = vsel %vm559, %v504, %v591
      %v624 = vsel %vm560, %v506, %v592
      %v625 = vsel %vm561, %v509, %v593
      %v626 = vsel %vm562, %v511, %v594
      %v627 = vsel %vm563, %v514, %v595
      %v628 = vsel %vm564, %v516, %v596
      %v629 = vsel %vm565, %v519, %v597
      %v630 = vsel %vm566, %v521, %v598
      %v631 = vsel %vm567, %v524, %v599
      %v632 = vsel %vm568, %v526, %v600
      %v633 = vsel %vm569, %v529, %v601
      %v634 = vsel %vm570, %v531, %v602
      %v635 = vsel %vm571, %v534, %v603
      %v636 = vsel %vm572, %v536, %v604
      %v637 = vsel %vm573, %v539, %v605
      %v638 = vsel %vm574, %v541, %v606
      %v639 = vpack.c.bf16 %v607, %v607
      %v640 = vpack.c.bf16 %v608, %v608
      %v641 = vpack.c.bf16 %v609, %v609
      %v642 = vpack.c.bf16 %v610, %v610
      %v643 = vpack.c.bf16 %v611, %v611
      %v644 = vpack.c.bf16 %v612, %v612
      %v645 = vpack.c.bf16 %v613, %v613
      %v646 = vpack.c.bf16 %v614, %v614
      %v647 = vpack.c.bf16 %v615, %v615
      %v648 = vpack.c.bf16 %v616, %v616
      %v649 = vpack.c.bf16 %v617, %v617
      %v650 = vpack.c.bf16 %v618, %v618
      %v651 = vpack.c.bf16 %v619, %v619
      %v652 = vpack.c.bf16 %v620, %v620
      %v653 = vpack.c.bf16 %v621, %v621
      %v654 = vpack.c.bf16 %v622, %v622
      %v655 = vpack.c.bf16 %v623, %v623
      %v656 = vpack.c.bf16 %v624, %v624
      %v657 = vpack.c.bf16 %v625, %v625
      %v658 = vpack.c.bf16 %v626, %v626
      %v659 = vpack.c.bf16 %v627, %v627
      %v660 = vpack.c.bf16 %v628, %v628
      %v661 = vpack.c.bf16 %v629, %v629
      %v662 = vpack.c.bf16 %v630, %v630
      %v663 = vpack.c.bf16 %v631, %v631
      %v664 = vpack.c.bf16 %v632, %v632
      %v665 = vpack.c.bf16 %v633, %v633
      %v666 = vpack.c.bf16 %v634, %v634
      %v667 = vpack.c.bf16 %v635, %v635
      %v668 = vpack.c.bf16 %v636, %v636
      %v669 = vpack.c.bf16 %v637, %v637
      %v670 = vpack.c.bf16 %v638, %v638
      %vm671 = vcmask 60416
      %672 = vst.msk [vmem:[%s254] sm:$0xf] %vm671, %v639
      %673 = vst.msk [vmem:[%s254 + $0x4] sm:$0xf] %vm671, %v640
      %674 = vst.msk [vmem:[%s254 + $0x8] sm:$0xf] %vm671, %v641
      %675 = vst.msk [vmem:[%s254 + $0xc] sm:$0xf] %vm671, %v642
      %676 = vst.msk [vmem:[%s254 + $0x10] sm:$0xf] %vm671, %v643
      %677 = vst.msk [vmem:[%s254 + $0x14] sm:$0xf] %vm671, %v644
      %678 = vst.msk [vmem:[%s254 + $0x18] sm:$0xf] %vm671, %v645
      %679 = vst.msk [vmem:[%s254 + $0x1c] sm:$0xf] %vm671, %v646
      %680 = vst.msk [vmem:[%s254 + $0x20] sm:$0xf] %vm671, %v647
      %681 = vst.msk [vmem:[%s254 + $0x24] sm:$0xf] %vm671, %v648
      %682 = vst.msk [vmem:[%s254 + $0x28] sm:$0xf] %vm671, %v649
      %683 = vst.msk [vmem:[%s254 + $0x2c] sm:$0xf] %vm671, %v650
      %684 = vst.msk [vmem:[%s254 + $0x30] sm:$0xf] %vm671, %v651
      %685 = vst.msk [vmem:[%s254 + $0x34] sm:$0xf] %vm671, %v652
      %686 = vst.msk [vmem:[%s254 + $0x38] sm:$0xf] %vm671, %v653
      %687 = vst.msk [vmem:[%s254 + $0x3c] sm:$0xf] %vm671, %v654
      %688 = vst.msk [vmem:[%s254 + $0x40] sm:$0xf] %vm671, %v655
      %689 = vst.msk [vmem:[%s254 + $0x44] sm:$0xf] %vm671, %v656
      %690 = vst.msk [vmem:[%s254 + $0x48] sm:$0xf] %vm671, %v657
      %691 = vst.msk [vmem:[%s254 + $0x4c] sm:$0xf] %vm671, %v658
      %692 = vst.msk [vmem:[%s254 + $0x50] sm:$0xf] %vm671, %v659
      %693 = vst.msk [vmem:[%s254 + $0x54] sm:$0xf] %vm671, %v660
      %694 = vst.msk [vmem:[%s254 + $0x58] sm:$0xf] %vm671, %v661
      %695 = vst.msk [vmem:[%s254 + $0x5c] sm:$0xf] %vm671, %v662
      %696 = vst.msk [vmem:[%s254 + $0x60] sm:$0xf] %vm671, %v663
      %697 = vst.msk [vmem:[%s254 + $0x64] sm:$0xf] %vm671, %v664
      %698 = vst.msk [vmem:[%s254 + $0x68] sm:$0xf] %vm671, %v665
      %699 = vst.msk [vmem:[%s254 + $0x6c] sm:$0xf] %vm671, %v666
      %700 = vst.msk [vmem:[%s254 + $0x70] sm:$0xf] %vm671, %v667
      %701 = vst.msk [vmem:[%s254 + $0x74] sm:$0xf] %vm671, %v668
      %702 = vst.msk [vmem:[%s254 + $0x78] sm:$0xf] %vm671, %v669
      %703 = vst.msk [vmem:[%s254 + $0x7c] sm:$0xf] %vm671, %v670
      %s704 = smul.u32 32, %s20
      %p705 = scmp.lt.s32.totalorder %s19, 1
      %s706 = scalar_select %p705, %s19, 1
      %p707 = scmp.lt.s32.totalorder %s704, 31
      %s708 = scalar_select %p707, %s704, 31
      %p709 = scmp.lt.s32.totalorder %s21, 0
      %s710 = scalar_select %p709, %s21, 0
      %s711 = sadd.s32 %s710, %s708
      %s712 = smul.addr %s706, 32
      %s713 = sadd.s32 %s711, %s712
      %s714 = smul.addr %s713, 4
      %s715 = scalar_lea.vmem %s3, %s714
      // Predicated region
      $region33: #{tpu_custom_call.1} parent=31 // pred_check
        %p716 = pneg %p135
      $region34: #{tpu_custom_call.1} parent=31 // pred_check_branch
        %718 = sbr.rel (%p716) target = $region36
      $region35: #{tpu_custom_call.1} parent=31 // pred_region
        %s719 = smul.u32 32, %s20
      $region36: #{tpu_custom_call.1} parent=31 // pred_fallthru
        _
    $region32: #{tpu_custom_call.1} parent=5 // pred_fallthru
      _
    %p720 = scmp.le.s32.totalorder 2, %s9
    // Predicated region
    $region37: #{tpu_custom_call.1} parent=5 // pred_check
      %p721 = pneg %p720
    $region38: #{tpu_custom_call.1} parent=5 // pred_check_branch
      %723 = sbr.rel (%p721) target = $region40
    $region39: #{tpu_custom_call.1} parent=5 // pred_region
      %s724 = ssub.s32 %s9, 2
      // Predicated region
      $region41: #{tpu_custom_call.1} parent=39 // pred_check
        %p725 = pneg %p141
      $region42: #{tpu_custom_call.1} parent=39 // pred_check_branch
        %727 = sbr.rel (%p725) target = $region44
      $region43: #{tpu_custom_call.1} parent=39 // pred_region
        %s728 = smul.u32 32, %s23
        %p729 = scmp.lt.s32.totalorder %s22, 1
        %s730 = scalar_select %p729, %s22, 1
        %p731 = scmp.lt.s32.totalorder %s728, 31
        %s732 = scalar_select %p731, %s728, 31
        %p733 = scmp.lt.s32.totalorder %s24, 0
        %s734 = scalar_select %p733, %s24, 0
        %s735 = sadd.s32 %s734, %s732
        %s736 = smul.addr %s730, 32
        %s737 = sadd.s32 %s735, %s736
        %s738 = smul.addr %s737, 4
        %s739 = scalar_lea.vmem %s3, %s738
      $region44: #{tpu_custom_call.1} parent=39 // pred_fallthru
        _
    $region40: #{tpu_custom_call.1} parent=5 // pred_fallthru
      _
  $region6: #{tpu_custom_call.1} parent=0 // loop_footer
    %s13 = sadd.s32 1, %s9
  $region7: #{tpu_custom_call.1} parent=0 // loop_footer_branch
    %8 = sbr.rel target = $region3
  $region8: #{tpu_custom_call.1} parent=0 // loop_exit
    _

</llo_original>
